<compile_context>
chip_gen: v7x
topology: tpu7x:2x2x1
jax: 0.10.0
libtpu: 0.0.40
codegen_flags: <defaults>
</compile_context>

<pallas_src>
import functools

import jax
import jax.numpy as jnp
from jax.experimental import pallas as pl
from jax.experimental.pallas import tpu as pltpu


# ---------------------------------------------------------------------------
# Shared encoder math (mlp forward + softmax + L2 norm + l_pos)
# ---------------------------------------------------------------------------

def _encoder_body(x, w1, b1, w2, b2, w3, b3, n, inv_T):
    """mlp forward on the stacked [2N, D_IN] batch.

    Returns (backbone_feature, q_normalized, k_normalized, l_pos/T).
    encoder_k == encoder_q here: params are copied at init and, with no
    gradient step on encoder_q, the momentum update keeps them identical.
    """
    h = jnp.dot(x, w1, preferred_element_type=jnp.float32) + b1
    h = jnp.maximum(h, 0.0)                                   # ReLU
    h = jnp.dot(h, w2, preferred_element_type=jnp.float32) + b2
    h = jnp.maximum(h, 0.0)                                   # ReLU
    h = jnp.dot(h, w3, preferred_element_type=jnp.float32) + b3

    # nn.Softmax(dim=1); denominator reciprocal runs on the EUP slot.
    m = jnp.max(h, axis=1, keepdims=True)
    e = jnp.exp(h - m)
    sm = e * pl.reciprocal(jnp.sum(e, axis=1, keepdims=True), approx=True)

    q_bb = sm[:n, :]                       # query backbone features
    k_bb = sm[n:, :]                       # key features

    def l2norm(v):                         # F.normalize(dim=1) via rsqrt (EUP)
        return v * jax.lax.rsqrt(jnp.sum(v * v, axis=1, keepdims=True) + 1e-24)

    q = l2norm(q_bb)
    k = l2norm(k_bb)
    l_pos = jnp.sum(q * k, axis=1, keepdims=True) * inv_T
    return q_bb, q, k, l_pos


# ---------------------------------------------------------------------------
# Kernels
# ---------------------------------------------------------------------------

def _moco_fused_kernel(x_ref, w1_ref, b1_ref, w2_ref, b2_ref, w3_ref, b3_ref,
                       queue_ref,
                       feat_ref, q_ref, k_ref, lpos_ref, lneg_ref,
                       q16_scr, *, n, inv_T):
    """Encoder on grid step 0 + one K-tile of l_neg per grid step.

    The K grid axis is 'arbitrary' (sequential), so the pl.when(step==0)
    encoder result in VMEM scratch is visible to every subsequent K step.
    """
    @pl.when(pl.program_id(0) == 0)
    def _():
        feat, q, k, l_pos = _encoder_body(
            x_ref[...], w1_ref[...], b1_ref[...], w2_ref[...], b2_ref[...],
            w3_ref[...], b3_ref[...], n, inv_T)
        feat_ref[...] = feat
        q_ref[...] = q
        k_ref[...] = k
        lpos_ref[...] = l_pos
        q16_scr[...] = q.astype(q16_scr.dtype)        # bf16 copy for the MXU

    # l_neg K-tile: bf16 x bf16 -> f32 accumulation on the MXU.
    # NOTE: contraction is on the RHS lane dim of the [tk, dim] tile; any
    # per-tile transpose is expected to hide behind the queue DMA (mem-bound).
    lneg_ref[...] = jax.lax.dot_general(
        q16_scr[...], queue_ref[...],
        dimension_numbers=(((1,), (1,)), ((), ())),
        preferred_element_type=jnp.float32) * inv_T


def _encoder_kernel(x_ref, w1_ref, b1_ref, w2_ref, b2_ref, w3_ref, b3_ref,
                    feat_ref, q_ref, q16_ref, k_ref, lpos_ref, *, n, inv_T):
    """Standalone encoder kernel (two-call split, used on v7x)."""
    feat, q, k, l_pos = _encoder_body(
        x_ref[...], w1_ref[...], b1_ref[...], w2_ref[...], b2_ref[...],
        w3_ref[...], b3_ref[...], n, inv_T)
    feat_ref[...] = feat
    q_ref[...] = q
    q16_ref[...] = q.astype(q16_ref.dtype)
    k_ref[...] = k
    lpos_ref[...] = l_pos


def _lneg_kernel(q16_ref, queue_ref, lneg_ref, *, inv_T):
    """One K-tile of l_neg = (q @ queue.T) / T; queue stored [K, dim] bf16."""
    lneg_ref[...] = jax.lax.dot_general(
        q16_ref[...], queue_ref[...],
        dimension_numbers=(((1,), (1,)), ((), ())),
        preferred_element_type=jnp.float32) * inv_T


def _enqueue_kernel(k_ref, old_slice_ref, new_slice_ref):
    """Write the N new keys into their queue slot (aliased, in place)."""
    del old_slice_ref                       # only present to carry the alias
    new_slice_ref[...] = k_ref[...].astype(new_slice_ref.dtype)


# ---------------------------------------------------------------------------
# Helpers
# ---------------------------------------------------------------------------

def _pick_k_tile(K, dim, n, *, vmem_budget_bytes=8 << 20):
    """K-tile for the streaming l_neg matmul.

    Keeps the double-buffered (bf16 queue tile + f32 l_neg tile) footprint
    under ~vmem_budget_bytes so it fits comfortably inside v7x's 32 MiB
    scoped-VMEM default (and trivially on v5e/v6e).  Prefers 128-multiples
    that divide K; never silently falls back to a whole-K tile.
    """
    per_tk = 2 * (dim * 2 + n * 4)          # 2 bufs * (queue row + lneg col)
    cap = max(128, vmem_budget_bytes // per_tk)
    if K <= cap:
        return K
    cap = (cap // 128) * 128
    for tk in range(min(cap, K), 127, -128):
        if K % tk == 0:
            return tk
    # No 128-aligned divisor <= cap: largest divisor <= cap (VMEM-safe).
    for tk in range(min(cap, K), 0, -1):
        if K % tk == 0:
            return tk
    return K


def _default_fuse_encoder():
    # v7x: keep the two-call split so the "parallel" K axis spans both
    # TensorCores.  Single-TC chips (v5e/v6e): fuse to save a launch and the
    # q HBM round-trip.
    try:
        kind = jax.devices()[0].device_kind.lower()
        return not any(t in kind for t in ("v7", "tpu7", "7x"))
    except Exception:
        return True


def init_moco_params(key, input_size, hidden1, hidden2, dim, K):
    """Deterministic parameter / buffer init (queue stored as [K, dim] bf16)."""
    ks = jax.random.split(key, 7)

    def linear(kw, kb, fan_in, fan_out):
        # nn.Linear default init: U(-1/sqrt(fan_in), 1/sqrt(fan_in)),
        # weights pre-transposed to [in, out] so the kernel does x @ W + b.
        bound = 1.0 / jnp.sqrt(jnp.float32(fan_in))
        w = jax.random.uniform(kw, (fan_in, fan_out), jnp.float32, -bound, bound)
        b = jax.random.uniform(kb, (1, fan_out), jnp.float32, -bound, bound)
        return w, b

    w1, b1 = linear(ks[0], ks[1], input_size, hidden1)
    w2, b2 = linear(ks[2], ks[3], hidden1, hidden2)
    w3, b3 = linear(ks[4], ks[5], hidden2, dim)

    # queue = normalize(randn(dim, K), dim=0), kept transposed as [K, dim],
    # stored bf16 (the l_neg stream is HBM-bound; bf16 halves its traffic).
    queue_kd = jax.random.normal(ks[6], (K, dim), jnp.float32)
    queue_kd = queue_kd * jax.lax.rsqrt(
        jnp.sum(queue_kd * queue_kd, axis=1, keepdims=True) + 1e-24)
    queue_kd = queue_kd.astype(jnp.bfloat16)
    queue_ptr = 0
    return (w1, b1, w2, b2, w3, b3), queue_kd, queue_ptr


# ---------------------------------------------------------------------------
# Forward
# ---------------------------------------------------------------------------

def moco_forward(im_q, im_k, params, queue_kd, queue_ptr, T=0.07,
                 fuse_encoder=None):
    """MoCo forward.

    Returns (l_pos, l_neg, labels, backbone_feature, new_queue, new_queue_ptr).
    logits == concat([l_pos, l_neg], axis=1); the pair is returned separately
    so downstream code can avoid the full-logits HBM re-read/re-write.
    queue_kd is the MoCo queue stored as [K, dim] bf16 (transposed layout).
    """
    w1, b1, w2, b2, w3, b3 = params
    N, d_in = im_q.shape
    K, dim = queue_kd.shape
    assert K % N == 0, "MoCo requires K % batch_size == 0"
    inv_T = float(1.0 / T)
    if fuse_encoder is None:
        fuse_encoder = _default_fuse_encoder()

    # TODO(synk): after real training steps encoder_k diverges from encoder_q
    # (momentum m=0.999); the shared-weight path is exact only while encoder_q
    # is not updated.  DDP shuffle / all_gather are identities single-process.
    x = jnp.concatenate([im_q, im_k], axis=0)                 # [2N, D_IN]

    tk = _pick_k_tile(K, dim, N)
    vmem_limit = 32 * 1024 * 1024
    const2 = lambda j: (0, 0)

    if fuse_encoder:
        # --- single fused call: encoder on step 0 + K-tiled l_neg stream ----
        feat, q, k, l_pos, l_neg = pl.pallas_call(
            functools.partial(_moco_fused_kernel, n=N, inv_T=inv_T),
            out_shape=(
                jax.ShapeDtypeStruct((N, dim), jnp.float32),   # backbone feat
                jax.ShapeDtypeStruct((N, dim), jnp.float32),   # q (normalized)
                jax.ShapeDtypeStruct((N, dim), jnp.float32),   # k (normalized)
                jax.ShapeDtypeStruct((N, 1), jnp.float32),     # l_pos / T
                jax.ShapeDtypeStruct((N, K), jnp.float32),     # l_neg / T
            ),
            grid=(K // tk,),
            in_specs=[
                pl.BlockSpec((2 * N, d_in), const2),
                pl.BlockSpec(w1.shape, const2),
                pl.BlockSpec(b1.shape, const2),
                pl.BlockSpec(w2.shape, const2),
                pl.BlockSpec(b2.shape, const2),
                pl.BlockSpec(w3.shape, const2),
                pl.BlockSpec(b3.shape, const2),
                pl.BlockSpec((tk, dim), lambda j: (j, 0)),     # queue K-tile
            ],
            out_specs=(
                pl.BlockSpec((N, dim), const2),
                pl.BlockSpec((N, dim), const2),
                pl.BlockSpec((N, dim), const2),
                pl.BlockSpec((N, 1), const2),
                pl.BlockSpec((N, tk), lambda j: (0, j)),       # lane-aligned
            ),
            scratch_shapes=[pltpu.VMEM((N, dim), jnp.bfloat16)],
            compiler_params=pltpu.CompilerParams(
                dimension_semantics=("arbitrary",),
                vmem_limit_bytes=vmem_limit),
        )(x, w1, b1, w2, b2, w3, b3, queue_kd)
    else:
        # --- two-call split (v7x): parallel K axis spans both TensorCores ---
        vmem = pl.BlockSpec(memory_space=pltpu.MemorySpace.VMEM)
        feat, q, q16, k, l_pos = pl.pallas_call(
            functools.partial(_encoder_kernel, n=N, inv_T=inv_T),
            out_shape=(
                jax.ShapeDtypeStruct((N, dim), jnp.float32),
                jax.ShapeDtypeStruct((N, dim), jnp.float32),
                jax.ShapeDtypeStruct((N, dim), jnp.bfloat16),
                jax.ShapeDtypeStruct((N, dim), jnp.float32),
                jax.ShapeDtypeStruct((N, 1), jnp.float32),
            ),
            in_specs=[vmem] * 7,
            out_specs=(vmem,) * 5,
        )(x, w1, b1, w2, b2, w3, b3)

        l_neg = pl.pallas_call(
            functools.partial(_lneg_kernel, inv_T=inv_T),
            out_shape=jax.ShapeDtypeStruct((N, K), jnp.float32),
            grid=(K // tk,),
            in_specs=[
                pl.BlockSpec((N, dim), lambda j: (0, 0)),      # q resident
                pl.BlockSpec((tk, dim), lambda j: (j, 0)),     # queue K-tile
            ],
            out_specs=pl.BlockSpec((N, tk), lambda j: (0, j)),
            compiler_params=pltpu.CompilerParams(
                dimension_semantics=("parallel",),
                vmem_limit_bytes=vmem_limit),
        )(q16, queue_kd)

    labels = jnp.zeros((N,), dtype=jnp.int32)

    # _dequeue_and_enqueue: in-place N-row slice write (aliased queue buffer).
    # bf16 rows: keep the slice 16-row aligned; otherwise fall back.
    if isinstance(queue_ptr, int) and N % 16 == 0 and queue_ptr % N == 0:
        blk = queue_ptr // N
        new_queue = pl.pallas_call(
            _enqueue_kernel,
            out_shape=jax.ShapeDtypeStruct((K, dim), queue_kd.dtype),
            grid=(1,),
            in_specs=[
                pl.BlockSpec((N, dim), lambda i: (0, 0)),          # new keys
                pl.BlockSpec((N, dim), lambda i: (blk, 0)),        # aliased slot
            ],
            out_specs=pl.BlockSpec((N, dim), lambda i: (blk, 0)),  # slot write
            input_output_aliases={1: 0},
        )(k, queue_kd)
    else:
        # TODO(synk): this path copies the whole queue; keep N a multiple of 16
        # and queue_ptr a Python int so the aliased in-place slice write is used.
        new_queue = jax.lax.dynamic_update_slice(
            queue_kd, k.astype(queue_kd.dtype), (queue_ptr, 0))
    new_queue_ptr = (queue_ptr + N) % K

    return l_pos, l_neg, labels, feat, new_queue, new_queue_ptr


# ---------------------------------------------------------------------------
# Pure-JAX reference (mirrors the PyTorch forward)
# ---------------------------------------------------------------------------

def _moco_forward_ref(im_q, im_k, params, queue_kd, T):
    w1, b1, w2, b2, w3, b3 = params

    def enc(x):
        h = jnp.maximum(x @ w1 + b1, 0.0)
        h = jnp.maximum(h @ w2 + b2, 0.0)
        h = h @ w3 + b3
        return jax.nn.softmax(h, axis=1)

    q = enc(im_q)
    feat = q
    q = q / jnp.linalg.norm(q, axis=1, keepdims=True)
    k = enc(im_k)
    k = k / jnp.linalg.norm(k, axis=1, keepdims=True)
    l_pos = jnp.sum(q * k, axis=1, keepdims=True)
    l_neg = q @ queue_kd.astype(jnp.float32).T
    logits = jnp.concatenate([l_pos, l_neg], axis=1) / T
    return logits, feat, k


# ---------------------------------------------------------------------------
# Demo
# ---------------------------------------------------------------------------

if __name__ == "__main__":
    # Small, MoCo-consistent shapes: batch=16, input=32, hidden1=32,
    # hidden2=16, feature dim=8, queue size K=256 (K % batch == 0).
    N, D_IN, H1, H2, DIM, K = 16, 32, 32, 16, 8, 256
    T = 0.07

    root = jax.random.PRNGKey(0)
    k_params, k_q, k_k = jax.random.split(root, 3)

    params, queue_kd, queue_ptr = init_moco_params(k_params, D_IN, H1, H2, DIM, K)
    im_q = jax.random.normal(k_q, (N, D_IN), jnp.float32)
    im_k = jax.random.normal(k_k, (N, D_IN), jnp.float32)

    l_pos, l_neg, labels, feat, new_queue, new_ptr = moco_forward(
        im_q, im_k, params, queue_kd, queue_ptr, T=T)
    jax.block_until_ready((l_pos, l_neg, labels, feat, new_queue))

    # Downstream loss should consume (l_pos, l_neg) directly; the concat here
    # is only to validate against the PyTorch-style logits layout.
    logits = jnp.concatenate([l_pos, l_neg], axis=1)

    ref_logits, ref_feat, ref_k = _moco_forward_ref(im_q, im_k, params,
                                                    queue_kd, T)

    assert logits.shape == (N, 1 + K)
    assert labels.shape == (N,) and int(jnp.sum(labels)) == 0
    assert feat.shape == (N, DIM)
    assert new_queue.shape == (K, DIM) and new_queue.dtype == jnp.bfloat16
    assert new_ptr == N % K
    assert bool(jnp.all(jnp.isfinite(logits)))
    assert bool(jnp.all(jnp.isfinite(feat)))
    # Numerics: bf16 queue/q path + approx reciprocal -> loose-but-meaningful.
    assert bool(jnp.allclose(feat, ref_feat, atol=5e-3, rtol=1e-2))
    assert bool(jnp.allclose(logits, ref_logits, atol=2.5e-1, rtol=5e-2))
    # Enqueue wrote exactly the N rows at queue_ptr; the rest is untouched.
    assert bool(jnp.allclose(new_queue[:N].astype(jnp.float32), ref_k,
                             atol=2e-2, rtol=2e-2))
    assert bool(jnp.array_equal(new_queue[N:], queue_kd[N:]))

    print("KERNEL_OK")
</pallas_src>

<mosaic_0001>
module attributes {stable_mosaic.version = 11 : i64} {
  func.func @_moco_fused_kernel(%arg0: i32, %arg1: memref<32x32xf32, #tpu.memory_space<vmem>>, %arg2: memref<32x32xf32, #tpu.memory_space<vmem>>, %arg3: memref<1x32xf32, #tpu.memory_space<vmem>>, %arg4: memref<32x16xf32, #tpu.memory_space<vmem>>, %arg5: memref<1x16xf32, #tpu.memory_space<vmem>>, %arg6: memref<16x8xf32, #tpu.memory_space<vmem>>, %arg7: memref<1x8xf32, #tpu.memory_space<vmem>>, %arg8: memref<256x8xbf16, #tpu.memory_space<vmem>>, %arg9: memref<16x8xf32, #tpu.memory_space<vmem>>, %arg10: memref<16x8xf32, #tpu.memory_space<vmem>>, %arg11: memref<16x8xf32, #tpu.memory_space<vmem>>, %arg12: memref<16x1xf32, #tpu.memory_space<vmem>>, %arg13: memref<16x256xf32, #tpu.memory_space<vmem>>, %arg14: memref<16x8xbf16, #tpu.memory_space<vmem>>) attributes {dimension_semantics = [#tpu.dimension_semantics<arbitrary>], iteration_bounds = array<i64: 1>, scalar_prefetch = 0 : i64, scratch_operands = 1 : i64, tpu.core_type = #tpu.core_type<tc>, window_params = [{pipeline_mode = #tpu.pipeline_mode<synchronous>, transform_indices = @transform_0, window_bounds = array<i64: 32, 32>}, {pipeline_mode = #tpu.pipeline_mode<synchronous>, transform_indices = @transform_1, window_bounds = array<i64: 32, 32>}, {pipeline_mode = #tpu.pipeline_mode<synchronous>, transform_indices = @transform_2, window_bounds = array<i64: 1, 32>}, {pipeline_mode = #tpu.pipeline_mode<synchronous>, transform_indices = @transform_3, window_bounds = array<i64: 32, 16>}, {pipeline_mode = #tpu.pipeline_mode<synchronous>, transform_indices = @transform_4, window_bounds = array<i64: 1, 16>}, {pipeline_mode = #tpu.pipeline_mode<synchronous>, transform_indices = @transform_5, window_bounds = array<i64: 16, 8>}, {pipeline_mode = #tpu.pipeline_mode<synchronous>, transform_indices = @transform_6, window_bounds = array<i64: 1, 8>}, {transform_indices = @transform_7, window_bounds = array<i64: 256, 8>}, {pipeline_mode = #tpu.pipeline_mode<synchronous>, transform_indices = @transform_8, window_bounds = array<i64: 16, 8>}, {pipeline_mode = #tpu.pipeline_mode<synchronous>, transform_indices = @transform_9, window_bounds = array<i64: 16, 8>}, {pipeline_mode = #tpu.pipeline_mode<synchronous>, transform_indices = @transform_10, window_bounds = array<i64: 16, 8>}, {pipeline_mode = #tpu.pipeline_mode<synchronous>, transform_indices = @transform_11, window_bounds = array<i64: 16, 1>}, {transform_indices = @transform_12, window_bounds = array<i64: 16, 256>}]} {
    %c0_i32 = arith.constant 0 : i32
    %0 = arith.cmpi eq, %arg0, %c0_i32 : i32
    %1 = arith.extui %0 : i1 to i32
    %c0_i32_0 = arith.constant 0 : i32
    %2 = arith.cmpi ne, %1, %c0_i32_0 : i32
    scf.if %2 {
      %c0_7 = arith.constant 0 : index
      %c0_8 = arith.constant 0 : index
      %9 = vector.load %arg1[%c0_7, %c0_8] : memref<32x32xf32, #tpu.memory_space<vmem>>, vector<32x32xf32>
      %c0_9 = arith.constant 0 : index
      %c0_10 = arith.constant 0 : index
      %10 = vector.load %arg2[%c0_9, %c0_10] : memref<32x32xf32, #tpu.memory_space<vmem>>, vector<32x32xf32>
      %c0_11 = arith.constant 0 : index
      %c0_12 = arith.constant 0 : index
      %11 = vector.load %arg3[%c0_11, %c0_12] : memref<1x32xf32, #tpu.memory_space<vmem>>, vector<1x32xf32>
      %c0_13 = arith.constant 0 : index
      %c0_14 = arith.constant 0 : index
      %12 = vector.load %arg4[%c0_13, %c0_14] : memref<32x16xf32, #tpu.memory_space<vmem>>, vector<32x16xf32>
      %c0_15 = arith.constant 0 : index
      %c0_16 = arith.constant 0 : index
      %13 = vector.load %arg5[%c0_15, %c0_16] : memref<1x16xf32, #tpu.memory_space<vmem>>, vector<1x16xf32>
      %c0_17 = arith.constant 0 : index
      %c0_18 = arith.constant 0 : index
      %14 = vector.load %arg6[%c0_17, %c0_18] : memref<16x8xf32, #tpu.memory_space<vmem>>, vector<16x8xf32>
      %c0_19 = arith.constant 0 : index
      %c0_20 = arith.constant 0 : index
      %15 = vector.load %arg7[%c0_19, %c0_20] : memref<1x8xf32, #tpu.memory_space<vmem>>, vector<1x8xf32>
      %cst_21 = arith.constant dense<0.000000e+00> : vector<32x32xf32>
      %16 = tpu.matmul %9, %10, %cst_21 {dimension_numbers = #tpu.dot_dimension_numbers<[1], [0], [0], [1], [0, 0, 1, 1], [], []>} : vector<32x32xf32>, vector<32x32xf32>, vector<32x32xf32> -> vector<32x32xf32>
      %17 = vector.broadcast %11 : vector<1x32xf32> to vector<32x32xf32>
      %18 = arith.addf %16, %17 : vector<32x32xf32>
      %cst_22 = arith.constant 0.000000e+00 : f32
      %19 = vector.broadcast %cst_22 : f32 to vector<32x32xf32>
      %20 = arith.maximumf %18, %19 : vector<32x32xf32>
      %cst_23 = arith.constant dense<0.000000e+00> : vector<32x16xf32>
      %21 = tpu.matmul %20, %12, %cst_23 {dimension_numbers = #tpu.dot_dimension_numbers<[1], [0], [0], [1], [0, 0, 1, 1], [], []>} : vector<32x32xf32>, vector<32x16xf32>, vector<32x16xf32> -> vector<32x16xf32>
      %22 = vector.broadcast %13 : vector<1x16xf32> to vector<32x16xf32>
      %23 = arith.addf %21, %22 : vector<32x16xf32>
      %cst_24 = arith.constant 0.000000e+00 : f32
      %24 = vector.broadcast %cst_24 : f32 to vector<32x16xf32>
      %25 = arith.maximumf %23, %24 : vector<32x16xf32>
      %cst_25 = arith.constant dense<0.000000e+00> : vector<32x8xf32>
      %26 = tpu.matmul %25, %14, %cst_25 {dimension_numbers = #tpu.dot_dimension_numbers<[1], [0], [0], [1], [0, 0, 1, 1], [], []>} : vector<32x16xf32>, vector<16x8xf32>, vector<32x8xf32> -> vector<32x8xf32>
      %27 = vector.broadcast %15 : vector<1x8xf32> to vector<32x8xf32>
      %28 = arith.addf %26, %27 : vector<32x8xf32>
      %cst_26 = arith.constant dense<0xFF800000> : vector<32xf32>
      %29 = vector.multi_reduction <maximumf>, %28, %cst_26 [1] : vector<32x8xf32> to vector<32xf32>
      %30 = vector.shape_cast %29 : vector<32xf32> to vector<32x1xf32>
      %31 = vector.broadcast %30 : vector<32x1xf32> to vector<32x8xf32>
      %32 = arith.subf %28, %31 : vector<32x8xf32>
      %33 = math.exp %32 : vector<32x8xf32>
      %cst_27 = arith.constant dense<0.000000e+00> : vector<32xf32>
      %34 = vector.multi_reduction <add>, %33, %cst_27 [1] : vector<32x8xf32> to vector<32xf32>
      %35 = vector.shape_cast %34 : vector<32xf32> to vector<32x1xf32>
      %36 = tpu.reciprocal %35 {approx = true} : vector<32x1xf32> -> vector<32x1xf32>
      %37 = vector.broadcast %36 : vector<32x1xf32> to vector<32x8xf32>
      %38 = arith.mulf %33, %37 : vector<32x8xf32>
      %39 = vector.extract_strided_slice %38 {offsets = [0, 0], sizes = [16, 8], strides = [1, 1]} : vector<32x8xf32> to vector<16x8xf32>
      %40 = vector.extract_strided_slice %38 {offsets = [16, 0], sizes = [16, 8], strides = [1, 1]} : vector<32x8xf32> to vector<16x8xf32>
      %41 = arith.mulf %39, %39 : vector<16x8xf32>
      %cst_28 = arith.constant dense<0.000000e+00> : vector<16xf32>
      %42 = vector.multi_reduction <add>, %41, %cst_28 [1] : vector<16x8xf32> to vector<16xf32>
      %43 = vector.shape_cast %42 : vector<16xf32> to vector<16x1xf32>
      %cst_29 = arith.constant 1.000000e-24 : f32
      %44 = vector.broadcast %cst_29 : f32 to vector<16x1xf32>
      %45 = arith.addf %43, %44 : vector<16x1xf32>
      %46 = math.rsqrt %45 : vector<16x1xf32>
      %47 = vector.broadcast %46 : vector<16x1xf32> to vector<16x8xf32>
      %48 = arith.mulf %39, %47 : vector<16x8xf32>
      %49 = arith.mulf %40, %40 : vector<16x8xf32>
      %cst_30 = arith.constant dense<0.000000e+00> : vector<16xf32>
      %50 = vector.multi_reduction <add>, %49, %cst_30 [1] : vector<16x8xf32> to vector<16xf32>
      %51 = vector.shape_cast %50 : vector<16xf32> to vector<16x1xf32>
      %cst_31 = arith.constant 1.000000e-24 : f32
      %52 = vector.broadcast %cst_31 : f32 to vector<16x1xf32>
      %53 = arith.addf %51, %52 : vector<16x1xf32>
      %54 = math.rsqrt %53 : vector<16x1xf32>
      %55 = vector.broadcast %54 : vector<16x1xf32> to vector<16x8xf32>
      %56 = arith.mulf %40, %55 : vector<16x8xf32>
      %57 = arith.mulf %48, %56 : vector<16x8xf32>
      %cst_32 = arith.constant dense<0.000000e+00> : vector<16xf32>
      %58 = vector.multi_reduction <add>, %57, %cst_32 [1] : vector<16x8xf32> to vector<16xf32>
      %59 = vector.shape_cast %58 : vector<16xf32> to vector<16x1xf32>
      %cst_33 = arith.constant 14.2857141 : f32
      %60 = vector.broadcast %cst_33 : f32 to vector<16x1xf32>
      %61 = arith.mulf %59, %60 : vector<16x1xf32>
      %c0_34 = arith.constant 0 : index
      %c0_35 = arith.constant 0 : index
      %62 = vector.load %arg9[%c0_34, %c0_35] : memref<16x8xf32, #tpu.memory_space<vmem>>, vector<16x8xf32>
      tpu.vector_store %arg9[%c0_34, %c0_35], %39 {strides = array<i32>} : memref<16x8xf32, #tpu.memory_space<vmem>>, vector<16x8xf32>,
      %c0_36 = arith.constant 0 : index
      %c0_37 = arith.constant 0 : index
      %63 = vector.load %arg10[%c0_36, %c0_37] : memref<16x8xf32, #tpu.memory_space<vmem>>, vector<16x8xf32>
      tpu.vector_store %arg10[%c0_36, %c0_37], %48 {strides = array<i32>} : memref<16x8xf32, #tpu.memory_space<vmem>>, vector<16x8xf32>,
      %c0_38 = arith.constant 0 : index
      %c0_39 = arith.constant 0 : index
      %64 = vector.load %arg11[%c0_38, %c0_39] : memref<16x8xf32, #tpu.memory_space<vmem>>, vector<16x8xf32>
      tpu.vector_store %arg11[%c0_38, %c0_39], %56 {strides = array<i32>} : memref<16x8xf32, #tpu.memory_space<vmem>>, vector<16x8xf32>,
      %c0_40 = arith.constant 0 : index
      %c0_41 = arith.constant 0 : index
      %65 = vector.load %arg12[%c0_40, %c0_41] : memref<16x1xf32, #tpu.memory_space<vmem>>, vector<16x1xf32>
      tpu.vector_store %arg12[%c0_40, %c0_41], %61 {strides = array<i32>} : memref<16x1xf32, #tpu.memory_space<vmem>>, vector<16x1xf32>,
      %66 = arith.truncf %48 : vector<16x8xf32> to vector<16x8xbf16>
      %c0_42 = arith.constant 0 : index
      %c0_43 = arith.constant 0 : index
      %67 = vector.load %arg14[%c0_42, %c0_43] : memref<16x8xbf16, #tpu.memory_space<vmem>>, vector<16x8xbf16>
      tpu.vector_store %arg14[%c0_42, %c0_43], %66 {strides = array<i32>} : memref<16x8xbf16, #tpu.memory_space<vmem>>, vector<16x8xbf16>,
    } else {
    }
    %c0 = arith.constant 0 : index
    %c0_1 = arith.constant 0 : index
    %3 = vector.load %arg14[%c0, %c0_1] : memref<16x8xbf16, #tpu.memory_space<vmem>>, vector<16x8xbf16>
    %c0_2 = arith.constant 0 : index
    %c0_3 = arith.constant 0 : index
    %4 = vector.load %arg8[%c0_2, %c0_3] : memref<256x8xbf16, #tpu.memory_space<vmem>>, vector<256x8xbf16>
    %cst = arith.constant dense<0.000000e+00> : vector<16x256xf32>
    %5 = tpu.matmul %3, %4, %cst {dimension_numbers = #tpu.dot_dimension_numbers<[1], [1], [0], [0], [0, 0, 1, 0], [], []>} : vector<16x8xbf16>, vector<256x8xbf16>, vector<16x256xf32> -> vector<16x256xf32>
    %cst_4 = arith.constant 14.2857141 : f32
    %6 = vector.broadcast %cst_4 : f32 to vector<16x256xf32>
    %7 = arith.mulf %5, %6 : vector<16x256xf32>
    %c0_5 = arith.constant 0 : index
    %c0_6 = arith.constant 0 : index
    %8 = vector.load %arg13[%c0_5, %c0_6] : memref<16x256xf32, #tpu.memory_space<vmem>>, vector<16x256xf32>
    tpu.vector_store %arg13[%c0_5, %c0_6], %7 {strides = array<i32>} : memref<16x256xf32, #tpu.memory_space<vmem>>, vector<16x256xf32>,
    return
  }
  func.func @transform_0(%arg0: i32) -> (i32, i32) {
    %c0_i32 = arith.constant 0 : i32
    %c0_i32_0 = arith.constant 0 : i32
    %c0_i32_1 = arith.constant 0 : i32
    return %c0_i32, %c0_i32_0 : i32, i32
  }
  func.func @transform_1(%arg0: i32) -> (i32, i32) {
    %c0_i32 = arith.constant 0 : i32
    %c0_i32_0 = arith.constant 0 : i32
    %c0_i32_1 = arith.constant 0 : i32
    return %c0_i32, %c0_i32_0 : i32, i32
  }
  func.func @transform_2(%arg0: i32) -> (i32, i32) {
    %c0_i32 = arith.constant 0 : i32
    %c0_i32_0 = arith.constant 0 : i32
    %c0_i32_1 = arith.constant 0 : i32
    return %c0_i32, %c0_i32_0 : i32, i32
  }
  func.func @transform_3(%arg0: i32) -> (i32, i32) {
    %c0_i32 = arith.constant 0 : i32
    %c0_i32_0 = arith.constant 0 : i32
    %c0_i32_1 = arith.constant 0 : i32
    return %c0_i32, %c0_i32_0 : i32, i32
  }
  func.func @transform_4(%arg0: i32) -> (i32, i32) {
    %c0_i32 = arith.constant 0 : i32
    %c0_i32_0 = arith.constant 0 : i32
    %c0_i32_1 = arith.constant 0 : i32
    return %c0_i32, %c0_i32_0 : i32, i32
  }
  func.func @transform_5(%arg0: i32) -> (i32, i32) {
    %c0_i32 = arith.constant 0 : i32
    %c0_i32_0 = arith.constant 0 : i32
    %c0_i32_1 = arith.constant 0 : i32
    return %c0_i32, %c0_i32_0 : i32, i32
  }
  func.func @transform_6(%arg0: i32) -> (i32, i32) {
    %c0_i32 = arith.constant 0 : i32
    %c0_i32_0 = arith.constant 0 : i32
    %c0_i32_1 = arith.constant 0 : i32
    return %c0_i32, %c0_i32_0 : i32, i32
  }
  func.func @transform_7(%arg0: i32) -> (i32, i32) {
    %c0_i32 = arith.constant 0 : i32
    %c0_i32_0 = arith.constant 0 : i32
    return %arg0, %c0_i32 : i32, i32
  }
  func.func @transform_8(%arg0: i32) -> (i32, i32) {
    %c0_i32 = arith.constant 0 : i32
    %c0_i32_0 = arith.constant 0 : i32
    %c0_i32_1 = arith.constant 0 : i32
    return %c0_i32, %c0_i32_0 : i32, i32
  }
  func.func @transform_9(%arg0: i32) -> (i32, i32) {
    %c0_i32 = arith.constant 0 : i32
    %c0_i32_0 = arith.constant 0 : i32
    %c0_i32_1 = arith.constant 0 : i32
    return %c0_i32, %c0_i32_0 : i32, i32
  }
  func.func @transform_10(%arg0: i32) -> (i32, i32) {
    %c0_i32 = arith.constant 0 : i32
    %c0_i32_0 = arith.constant 0 : i32
    %c0_i32_1 = arith.constant 0 : i32
    return %c0_i32, %c0_i32_0 : i32, i32
  }
  func.func @transform_11(%arg0: i32) -> (i32, i32) {
    %c0_i32 = arith.constant 0 : i32
    %c0_i32_0 = arith.constant 0 : i32
    %c0_i32_1 = arith.constant 0 : i32
    return %c0_i32, %c0_i32_0 : i32, i32
  }
  func.func @transform_12(%arg0: i32) -> (i32, i32) {
    %c0_i32 = arith.constant 0 : i32
    %c0_i32_0 = arith.constant 0 : i32
    return %c0_i32, %arg0 : i32, i32
  }
}

</mosaic_0001>

<llo_original>
// kernel: tpu_custom_call.1
$region0: #{tpu_custom_call.1}
  #allocation0 [shape = 'u32[]', space=smem, size = 0x4, offset = 0x4, fixed_abs, tag = 'smem constant byte address 0x4 - core index']
  #allocation1 [shape = 'u32[144,128]{1,0:T(1,128)}', space=vmem, size = 0x12000, scoped, tag = 'internal scratch']
  #allocation2 [shape = 'bf16[16,8]{1,0:T(16,128)(2,1)}', space=vmem, size = 0x1000, scoped, tag = 'scratch operand']
  %s0 = inlined_call_operand.vmem [shape: f32[32,32], index: 0, kind: input, shape index: {}]
  %s1 = inlined_call_operand.vmem [shape: f32[32,32], index: 1, kind: input, shape index: {}]
  %s2 = inlined_call_operand.vmem [shape: f32[1,32], index: 2, kind: input, shape index: {}]
  %s3 = inlined_call_operand.vmem [shape: f32[32,16], index: 3, kind: input, shape index: {}]
  %s4 = inlined_call_operand.vmem [shape: f32[1,16], index: 4, kind: input, shape index: {}]
  %s5 = inlined_call_operand.vmem [shape: f32[16,8], index: 5, kind: input, shape index: {}]
  %s6 = inlined_call_operand.vmem [shape: f32[1,8], index: 6, kind: input, shape index: {}]
  %s7 = inlined_call_operand.vmem [shape: bf16[256,8], index: 7, kind: input, shape index: {}]
  %s8 = inlined_call_operand.vmem [shape: f32[16,8], index: 8, kind: output, shape index: {0}]
  %s9 = inlined_call_operand.vmem [shape: f32[16,8], index: 9, kind: output, shape index: {1}]
  %s10 = inlined_call_operand.vmem [shape: f32[16,8], index: 10, kind: output, shape index: {2}]
  %s11 = inlined_call_operand.vmem [shape: f32[16,1], index: 11, kind: output, shape index: {3}]
  %s12 = inlined_call_operand.hbm [shape: f32[16,256], index: 12, kind: output, shape index: {4}]
  %13 = xla_tuple %s8, %s9, %s10, %s11, %s12
  %s14 = sld [smem:[#allocation0]]
  $region78: #{tpu_custom_call.1} parent=0
    _
  %s16 = ssub.s32 1, %s14
  %s17 = scalar_select 0, %s16, %s14
  $region1: #{tpu_custom_call.1} parent=0
    #allocation3 [shape = 'u8[16384]{0}', space=vmem, size = 0x4000, scoped, tag = 'output window, operand 4, single buffered']
    #allocation4 [shape = 's32[1]{0}', space=sflag, size = 0x4, scoped, tag = 'scoped memory for tpu_custom_call.1']
    %18 = vsyncpa [#allocation4], 0
    // Predicated region
    $region2: #{tpu_custom_call.1} parent=1 // pred_check
      _
    $region3: #{tpu_custom_call.1} parent=1 // pred_check_branch
      %20 = sbr.rel (0) target = $region5
    $region4: #{tpu_custom_call.1} parent=1 // pred_region
      _
    $region5: #{tpu_custom_call.1} parent=1 // pred_fallthru
      _
    // Predicated region
    $region6: #{tpu_custom_call.1} parent=1 // pred_check
      _
    $region7: #{tpu_custom_call.1} parent=1 // pred_check_branch
      %22 = sbr.rel (0) target = $region9
    $region8: #{tpu_custom_call.1} parent=1 // pred_region
      _
    $region9: #{tpu_custom_call.1} parent=1 // pred_fallthru
      _
    // Predicated region
    $region10: #{tpu_custom_call.1} parent=1 // pred_check
      _
    $region11: #{tpu_custom_call.1} parent=1 // pred_check_branch
      %24 = sbr.rel (0) target = $region13
    $region12: #{tpu_custom_call.1} parent=1 // pred_region
      _
    $region13: #{tpu_custom_call.1} parent=1 // pred_fallthru
      _
    // Predicated region
    $region14: #{tpu_custom_call.1} parent=1 // pred_check
      _
    $region15: #{tpu_custom_call.1} parent=1 // pred_check_branch
      %26 = sbr.rel (0) target = $region17
    $region16: #{tpu_custom_call.1} parent=1 // pred_region
      _
    $region17: #{tpu_custom_call.1} parent=1 // pred_fallthru
      _
    // Predicated region
    $region18: #{tpu_custom_call.1} parent=1 // pred_check
      _
    $region19: #{tpu_custom_call.1} parent=1 // pred_check_branch
      %28 = sbr.rel (0) target = $region21
    $region20: #{tpu_custom_call.1} parent=1 // pred_region
      _
    $region21: #{tpu_custom_call.1} parent=1 // pred_fallthru
      _
    // Predicated region
    $region22: #{tpu_custom_call.1} parent=1 // pred_check
      _
    $region23: #{tpu_custom_call.1} parent=1 // pred_check_branch
      %30 = sbr.rel (0) target = $region25
    $region24: #{tpu_custom_call.1} parent=1 // pred_region
      _
    $region25: #{tpu_custom_call.1} parent=1 // pred_fallthru
      _
    // Predicated region
    $region26: #{tpu_custom_call.1} parent=1 // pred_check
      _
    $region27: #{tpu_custom_call.1} parent=1 // pred_check_branch
      %32 = sbr.rel (0) target = $region29
    $region28: #{tpu_custom_call.1} parent=1 // pred_region
      _
    $region29: #{tpu_custom_call.1} parent=1 // pred_fallthru
      _
    // Predicated region
    $region30: #{tpu_custom_call.1} parent=1 // pred_check
      _
    $region31: #{tpu_custom_call.1} parent=1 // pred_check_branch
      %34 = sbr.rel (0) target = $region33
    $region32: #{tpu_custom_call.1} parent=1 // pred_region
      _
    $region33: #{tpu_custom_call.1} parent=1 // pred_fallthru
      _
    %p36 = scmp.eq.s32.totalorder 0, 0
    // Predicated region
    $region34: #{tpu_custom_call.1} parent=1 // pred_check
      %p37 = pneg %p36
    $region35: #{tpu_custom_call.1} parent=1 // pred_check_branch
      %39 = sbr.rel (%p37) target = $region37
    $region36: #{tpu_custom_call.1} parent=1 // pred_region
      %v40 = vld [vmem:[%s0] sm:$0xff]
      %v41 = vld [vmem:[%s0 + $0x8] sm:$0xff]
      %v42 = vld [vmem:[%s0 + $0x10] sm:$0xff]
      %v43 = vld [vmem:[%s0 + $0x18] sm:$0xff]
      %v44 = vld [vmem:[%s1] sm:$0xff]
      %v45 = vld [vmem:[%s1 + $0x8] sm:$0xff]
      %v46 = vld [vmem:[%s1 + $0x10] sm:$0xff]
      %v47 = vld [vmem:[%s1 + $0x18] sm:$0xff]
      %v48 = vld [vmem:[%s2] sm:$0x1]
      %v49 = vld [vmem:[%s3] sm:$0xff]
      %v50 = vld [vmem:[%s3 + $0x8] sm:$0xff]
      %v51 = vld [vmem:[%s3 + $0x10] sm:$0xff]
      %v52 = vld [vmem:[%s3 + $0x18] sm:$0xff]
      %v53 = vld [vmem:[%s4] sm:$0x1]
      %v54 = vld [vmem:[%s5] sm:$0xff]
      %v55 = vld [vmem:[%s5 + $0x8] sm:$0xff]
      %v56 = vld [vmem:[%s6] sm:$0x1]
      %v58 = vlaneseq
      %v59 = vshrl.u32 %v58, 7
      %v60 = vsub.s32 0, %v59
      %v61 = vrot.slane %v48, %v60
      %vm63 = vcmask 261120
      %v65 = vsel %vm63, %v40, 0
      %v68 = vsel %vm63, %v41, 0
      %v71 = vsel %vm63, %v42, 0
      %v74 = vsel %vm63, %v43, 0
      %76 = vmatprep.subr.mxu0 0.0
      %77 = vmatpush1.msra.mxu0 %v44
      %78 = vmatprep.subr.mxu0 0.0
      %79 = vmatpush1.msra.mxu0 %v45
      %80 = vmatprep.subr.mxu0 0.0
      %81 = vmatpush1.msra.mxu0 %v46
      %82 = vmatprep.subr.mxu0 0.0
      %83 = vmatpush1.msra.mxu0 %v47
      %84 = vmatprep.subr.mxu0 0.0
      %85 = vmatpush1.msra.mxu0 0.0
      %86 = vmatprep.subr.mxu0 0.0
      %87 = vmatpush1.msra.mxu0 0.0
      %88 = vmatprep.subr.mxu0 0.0
      %89 = vmatpush1.msra.mxu0 0.0
      %90 = vmatprep.subr.mxu0 0.0
      %91 = vmatpush1.msra.mxu0 0.0
      %92 = vmatprep.subr.mxu0 0.0
      %93 = vmatpush1.msra.mxu0 0.0
      %94 = vmatprep.subr.mxu0 0.0
      %95 = vmatpush1.msra.mxu0 0.0
      %96 = vmatprep.subr.mxu0 0.0
      %97 = vmatpush1.msra.mxu0 0.0
      %98 = vmatprep.subr.mxu0 0.0
      %99 = vmatpush1.msra.mxu0 0.0
      %100 = vmatprep.subr.mxu0 0.0
      %101 = vmatpush1.msra.mxu0 0.0
      %102 = vmatprep.subr.mxu0 0.0
      %103 = vmatpush1.msra.mxu0 0.0
      %104 = vmatprep.subr.mxu0 0.0
      %105 = vmatpush1.msra.mxu0 0.0
      %106 = vmatprep.subr.mxu0 0.0
      %107 = vmatpush1.msra.mxu0 0.0
      %108 = vmatprep.subr.mxu0 0.0
      %109 = vmatpush1.msra.mxu0 0.0
      %110 = vmatprep.subr.mxu0 0.0
      %111 = vmatpush1.msra.mxu0 0.0
      %112 = vmatprep.subr.mxu0 0.0
      %113 = vmatpush1.msra.mxu0 0.0
      %114 = vmatprep.subr.mxu0 0.0
      %115 = vmatpush1.msra.mxu0 0.0
      %116 = vmatprep.subr.mxu0 0.0
      %117 = vmatpush1.msra.mxu0 0.0
      %118 = vmatprep.subr.mxu0 0.0
      %119 = vmatpush1.msra.mxu0 0.0
      %120 = vmatprep.subr.mxu0 0.0
      %121 = vmatpush1.msra.mxu0 0.0
      %122 = vmatprep.subr.mxu0 0.0
      %123 = vmatpush1.msra.mxu0 0.0
      %124 = vmatprep.subr.mxu0 0.0
      %125 = vmatpush1.msra.mxu0 0.0
      %126 = vmatprep.subr.mxu0 0.0
      %127 = vmatpush1.msra.mxu0 0.0
      %128 = vmatprep.subr.mxu0 0.0
      %129 = vmatpush1.msra.mxu0 0.0
      %130 = vmatprep.subr.mxu0 0.0
      %131 = vmatpush1.msra.mxu0 0.0
      %132 = vmatprep.subr.mxu0 0.0
      %133 = vmatpush1.msra.mxu0 0.0
      %134 = vmatprep.subr.mxu0 0.0
      %135 = vmatpush1.msra.mxu0 0.0
      %136 = vmatprep.subr.mxu0 0.0
      %137 = vmatpush1.msra.mxu0 0.0
      %138 = vmatprep.subr.mxu0 0.0
      %139 = vmatpush1.msra.mxu0 0.0
      %140 = vmatprep.mubr.f32.mxu0 0.0
      %141 = vmatmul.mubr.f32.gmra.mrb[0].mxu0 %v65
      %v142 = vpop.f32.mrb[0].mxu0
      %v143 = vadd.f32 %v61, %v142
      %v144 = vpop.f32.mrb[0].mxu0
      %145 = vmatprep.mubr.f32.mxu0 0.0
      %146 = vmatmul.mubr.f32.gmra.mrb[0].mxu0 %v68
      %v147 = vpop.f32.mrb[0].mxu0
      %v148 = vadd.f32 %v61, %v147
      %v149 = vpop.f32.mrb[0].mxu0
      %150 = vmatprep.mubr.f32.mxu0 0.0
      %151 = vmatmul.mubr.f32.gmra.mrb[0].mxu0 %v71
      %v152 = vpop.f32.mrb[0].mxu0
      %v153 = vadd.f32 %v61, %v152
      %v154 = vpop.f32.mrb[0].mxu0
      %155 = vmatprep.mubr.f32.mxu0 0.0
      %156 = vmatmul.mubr.f32.gmra.mrb[0].mxu0 %v74
      %v157 = vpop.f32.mrb[0].mxu0
      %v158 = vadd.f32 %v61, %v157
      %v159 = vpop.f32.mrb[0].mxu0
      %160 = vdwg.mxu0
      %v161 = vmax.f32 %v143, 0.0
      %v162 = vmax.f32 %v148, 0.0
      %v163 = vmax.f32 %v153, 0.0
      %v164 = vmax.f32 %v158, 0.0
      %v166 = vlaneseq
      %v167 = vshrl.u32 %v166, 7
      %v168 = vsub.s32 0, %v167
      %v169 = vrot.slane %v53, %v168
      %v172 = vsel %vm63, %v161, 0
      %v175 = vsel %vm63, %v162, 0
      %v178 = vsel %vm63, %v163, 0
      %v181 = vsel %vm63, %v164, 0
      %183 = vmatprep.subr.mxu0 0.0
      %184 = vmatpush1.msra.mxu0 %v49
      %185 = vmatprep.subr.mxu0 0.0
      %186 = vmatpush1.msra.mxu0 %v50
      %187 = vmatprep.subr.mxu0 0.0
      %188 = vmatpush1.msra.mxu0 %v51
      %189 = vmatprep.subr.mxu0 0.0
      %190 = vmatpush1.msra.mxu0 %v52
      %191 = vmatprep.subr.mxu0 0.0
      %192 = vmatpush1.msra.mxu0 0.0
      %193 = vmatprep.subr.mxu0 0.0
      %194 = vmatpush1.msra.mxu0 0.0
      %195 = vmatprep.subr.mxu0 0.0
      %196 = vmatpush1.msra.mxu0 0.0
      %197 = vmatprep.subr.mxu0 0.0
      %198 = vmatpush1.msra.mxu0 0.0
      %199 = vmatprep.subr.mxu0 0.0
      %200 = vmatpush1.msra.mxu0 0.0
      %201 = vmatprep.subr.mxu0 0.0
      %202 = vmatpush1.msra.mxu0 0.0
      %203 = vmatprep.subr.mxu0 0.0
      %204 = vmatpush1.msra.mxu0 0.0
      %205 = vmatprep.subr.mxu0 0.0
      %206 = vmatpush1.msra.mxu0 0.0
      %207 = vmatprep.subr.mxu0 0.0
      %208 = vmatpush1.msra.mxu0 0.0
      %209 = vmatprep.subr.mxu0 0.0
      %210 = vmatpush1.msra.mxu0 0.0
      %211 = vmatprep.subr.mxu0 0.0
      %212 = vmatpush1.msra.mxu0 0.0
      %213 = vmatprep.subr.mxu0 0.0
      %214 = vmatpush1.msra.mxu0 0.0
      %215 = vmatprep.subr.mxu0 0.0
      %216 = vmatpush1.msra.mxu0 0.0
      %217 = vmatprep.subr.mxu0 0.0
      %218 = vmatpush1.msra.mxu0 0.0
      %219 = vmatprep.subr.mxu0 0.0
      %220 = vmatpush1.msra.mxu0 0.0
      %221 = vmatprep.subr.mxu0 0.0
      %222 = vmatpush1.msra.mxu0 0.0
      %223 = vmatprep.subr.mxu0 0.0
      %224 = vmatpush1.msra.mxu0 0.0
      %225 = vmatprep.subr.mxu0 0.0
      %226 = vmatpush1.msra.mxu0 0.0
      %227 = vmatprep.subr.mxu0 0.0
      %228 = vmatpush1.msra.mxu0 0.0
      %229 = vmatprep.subr.mxu0 0.0
      %230 = vmatpush1.msra.mxu0 0.0
      %231 = vmatprep.subr.mxu0 0.0
      %232 = vmatpush1.msra.mxu0 0.0
      %233 = vmatprep.subr.mxu0 0.0
      %234 = vmatpush1.msra.mxu0 0.0
      %235 = vmatprep.subr.mxu0 0.0
      %236 = vmatpush1.msra.mxu0 0.0
      %237 = vmatprep.subr.mxu0 0.0
      %238 = vmatpush1.msra.mxu0 0.0
      %239 = vmatprep.subr.mxu0 0.0
      %240 = vmatpush1.msra.mxu0 0.0
      %241 = vmatprep.subr.mxu0 0.0
      %242 = vmatpush1.msra.mxu0 0.0
      %243 = vmatprep.subr.mxu0 0.0
      %244 = vmatpush1.msra.mxu0 0.0
      %245 = vmatprep.subr.mxu0 0.0
      %246 = vmatpush1.msra.mxu0 0.0
      %247 = vmatprep.mubr.f32.mxu0 0.0
      %248 = vmatmul.mubr.f32.gmra.mrb[0].mxu0 %v172
      %v249 = vpop.f32.mrb[0].mxu0
      %v250 = vadd.f32 %v169, %v249
      %v251 = vpop.f32.mrb[0].mxu0
      %252 = vmatprep.mubr.f32.mxu0 0.0
      %253 = vmatmul.mubr.f32.gmra.mrb[0].mxu0 %v175
      %v254 = vpop.f32.mrb[0].mxu0
      %v255 = vadd.f32 %v169, %v254
      %v256 = vpop.f32.mrb[0].mxu0
      %257 = vmatprep.mubr.f32.mxu0 0.0
      %258 = vmatmul.mubr.f32.gmra.mrb[0].mxu0 %v178
      %v259 = vpop.f32.mrb[0].mxu0
      %v260 = vadd.f32 %v169, %v259
      %v261 = vpop.f32.mrb[0].mxu0
      %262 = vmatprep.mubr.f32.mxu0 0.0
      %263 = vmatmul.mubr.f32.gmra.mrb[0].mxu0 %v181
      %v264 = vpop.f32.mrb[0].mxu0
      %v265 = vadd.f32 %v169, %v264
      %v266 = vpop.f32.mrb[0].mxu0
      %267 = vdwg.mxu0
      %v268 = vmax.f32 %v250, 0.0
      %v269 = vmax.f32 %v255, 0.0
      %v270 = vmax.f32 %v260, 0.0
      %v271 = vmax.f32 %v265, 0.0
      %v273 = vlaneseq
      %v274 = vshrl.u32 %v273, 7
      %v275 = vsub.s32 0, %v274
      %v276 = vrot.slane %v56, %v275
      %vm278 = vcmask 130048
      %v280 = vsel %vm278, %v268, 0
      %v283 = vsel %vm278, %v269, 0
      %v286 = vsel %vm278, %v270, 0
      %v289 = vsel %vm278, %v271, 0
      %291 = vmatprep.subr.mxu0 0.0
      %292 = vmatpush1.msra.mxu0 %v54
      %293 = vmatprep.subr.mxu0 0.0
      %294 = vmatpush1.msra.mxu0 %v55
      %295 = vmatprep.subr.mxu0 0.0
      %296 = vmatpush1.msra.mxu0 0.0
      %297 = vmatprep.subr.mxu0 0.0
      %298 = vmatpush1.msra.mxu0 0.0
      %299 = vmatprep.subr.mxu0 0.0
      %300 = vmatpush1.msra.mxu0 0.0
      %301 = vmatprep.subr.mxu0 0.0
      %302 = vmatpush1.msra.mxu0 0.0
      %303 = vmatprep.subr.mxu0 0.0
      %304 = vmatpush1.msra.mxu0 0.0
      %305 = vmatprep.subr.mxu0 0.0
      %306 = vmatpush1.msra.mxu0 0.0
      %307 = vmatprep.subr.mxu0 0.0
      %308 = vmatpush1.msra.mxu0 0.0
      %309 = vmatprep.subr.mxu0 0.0
      %310 = vmatpush1.msra.mxu0 0.0
      %311 = vmatprep.subr.mxu0 0.0
      %312 = vmatpush1.msra.mxu0 0.0
      %313 = vmatprep.subr.mxu0 0.0
      %314 = vmatpush1.msra.mxu0 0.0
      %315 = vmatprep.subr.mxu0 0.0
      %316 = vmatpush1.msra.mxu0 0.0
      %317 = vmatprep.subr.mxu0 0.0
      %318 = vmatpush1.msra.mxu0 0.0
      %319 = vmatprep.subr.mxu0 0.0
      %320 = vmatpush1.msra.mxu0 0.0
      %321 = vmatprep.subr.mxu0 0.0
      %322 = vmatpush1.msra.mxu0 0.0
      %323 = vmatprep.subr.mxu0 0.0
      %324 = vmatpush1.msra.mxu0 0.0
      %325 = vmatprep.subr.mxu0 0.0
      %326 = vmatpush1.msra.mxu0 0.0
      %327 = vmatprep.subr.mxu0 0.0
      %328 = vmatpush1.msra.mxu0 0.0
      %329 = vmatprep.subr.mxu0 0.0
      %330 = vmatpush1.msra.mxu0 0.0
      %331 = vmatprep.subr.mxu0 0.0
      %332 = vmatpush1.msra.mxu0 0.0
      %333 = vmatprep.subr.mxu0 0.0
      %334 = vmatpush1.msra.mxu0 0.0
      %335 = vmatprep.subr.mxu0 0.0
      %336 = vmatpush1.msra.mxu0 0.0
      %337 = vmatprep.subr.mxu0 0.0
      %338 = vmatpush1.msra.mxu0 0.0
      %339 = vmatprep.subr.mxu0 0.0
      %340 = vmatpush1.msra.mxu0 0.0
      %341 = vmatprep.subr.mxu0 0.0
      %342 = vmatpush1.msra.mxu0 0.0
      %343 = vmatprep.subr.mxu0 0.0
      %344 = vmatpush1.msra.mxu0 0.0
      %345 = vmatprep.subr.mxu0 0.0
      %346 = vmatpush1.msra.mxu0 0.0
      %347 = vmatprep.subr.mxu0 0.0
      %348 = vmatpush1.msra.mxu0 0.0
      %349 = vmatprep.subr.mxu0 0.0
      %350 = vmatpush1.msra.mxu0 0.0
      %351 = vmatprep.subr.mxu0 0.0
      %352 = vmatpush1.msra.mxu0 0.0
      %353 = vmatprep.subr.mxu0 0.0
      %354 = vmatpush1.msra.mxu0 0.0
      %355 = vmatprep.mubr.f32.mxu0 0.0
      %356 = vmatmul.mubr.f32.gmra.mrb[0].mxu0 %v280
      %v357 = vpop.f32.mrb[0].mxu0
      %v358 = vadd.f32 %v276, %v357
      %v359 = vpop.f32.mrb[0].mxu0
      %360 = vmatprep.mubr.f32.mxu0 0.0
      %361 = vmatmul.mubr.f32.gmra.mrb[0].mxu0 %v283
      %v362 = vpop.f32.mrb[0].mxu0
      %v363 = vadd.f32 %v276, %v362
      %v364 = vpop.f32.mrb[0].mxu0
      %365 = vmatprep.mubr.f32.mxu0 0.0
      %366 = vmatmul.mubr.f32.gmra.mrb[0].mxu0 %v286
      %v367 = vpop.f32.mrb[0].mxu0
      %v368 = vadd.f32 %v276, %v367
      %v369 = vpop.f32.mrb[0].mxu0
      %370 = vmatprep.mubr.f32.mxu0 0.0
      %371 = vmatmul.mubr.f32.gmra.mrb[0].mxu0 %v289
      %v372 = vpop.f32.mrb[0].mxu0
      %v373 = vadd.f32 %v276, %v372
      %v374 = vpop.f32.mrb[0].mxu0
      %375 = vdwg.mxu0
      %vm376 = vcmask 64512
      %v377 = vsel %vm376, %v358, -inf
      %378 = vmax.xlane.f32.xlu0 %v377
      %v379 = vpop.xlane.xlu0 %378
      %v380 = vsel %vm376, %v363, -inf
      %381 = vmax.xlane.f32.xlu0 %v380
      %v382 = vpop.xlane.xlu0 %381
      %v383 = vsel %vm376, %v368, -inf
      %384 = vmax.xlane.f32.xlu0 %v383
      %v385 = vpop.xlane.xlu0 %384
      %v386 = vsel %vm376, %v373, -inf
      %387 = vmax.xlane.f32.xlu0 %v386
      %v388 = vpop.xlane.xlu0 %387
      %v389 = vsub.f32 %v358, %v379
      %v390 = vsub.f32 %v363, %v382
      %v391 = vsub.f32 %v368, %v385
      %v392 = vsub.f32 %v373, %v388
      %v393 = vmul.f32 %v389, 1.442695
      %v394 = vpow.pop %v393
      %v395 = vmul.f32 %v390, 1.442695
      %v396 = vpow.pop %v395
      %v397 = vmul.f32 %v391, 1.442695
      %v398 = vpow.pop %v397
      %v399 = vmul.f32 %v392, 1.442695
      %v400 = vpow.pop %v399
      %v401 = vsel %vm376, %v394, 0.0
      %402 = vadd.xlane.f32.xlu0 %v401
      %v403 = vpop.xlane.xlu0 %402
      %v404 = vsel %vm376, %v396, 0.0
      %405 = vadd.xlane.f32.xlu0 %v404
      %v406 = vpop.xlane.xlu0 %405
      %v407 = vsel %vm376, %v398, 0.0
      %408 = vadd.xlane.f32.xlu0 %v407
      %v409 = vpop.xlane.xlu0 %408
      %v410 = vsel %vm376, %v400, 0.0
      %411 = vadd.xlane.f32.xlu0 %v410
      %v412 = vpop.xlane.xlu0 %411
      %v413 = vrcp.pop %v403
      %v414 = vrcp.pop %v406
      %v415 = vrcp.pop %v409
      %v416 = vrcp.pop %v412
      %v417 = vmul.f32 %v394, %v413
      %v418 = vmul.f32 %v396, %v414
      %v419 = vmul.f32 %v398, %v415
      %v420 = vmul.f32 %v400, %v416
      %v421 = vmul.f32 %v417, %v417
      %v422 = vmul.f32 %v418, %v418
      %v423 = vsel %vm376, %v421, 0.0
      %424 = vadd.xlane.f32.xlu0 %v423
      %v425 = vpop.xlane.xlu0 %424
      %v426 = vsel %vm376, %v422, 0.0
      %427 = vadd.xlane.f32.xlu0 %v426
      %v428 = vpop.xlane.xlu0 %427
      %v429 = vadd.f32 %v425, 1e-24
      %v430 = vadd.f32 %v428, 1e-24
      %v431 = vrsqrt.pop %v429
      %v432 = vrsqrt.pop %v430
      %v433 = vmul.f32 %v417, %v431
      %v434 = vmul.f32 %v418, %v432
      %v435 = vmul.f32 %v419, %v419
      %v436 = vmul.f32 %v420, %v420
      %v437 = vsel %vm376, %v435, 0.0
      %438 = vadd.xlane.f32.xlu0 %v437
      %v439 = vpop.xlane.xlu0 %438
      %v440 = vsel %vm376, %v436, 0.0
      %441 = vadd.xlane.f32.xlu0 %v440
      %v442 = vpop.xlane.xlu0 %441
      %v443 = vadd.f32 %v439, 1e-24
      %v444 = vadd.f32 %v442, 1e-24
      %v445 = vrsqrt.pop %v443
      %v446 = vrsqrt.pop %v444
      %v447 = vmul.f32 %v419, %v445
      %v448 = vmul.f32 %v420, %v446
      %v449 = vmul.f32 %v433, %v447
      %v450 = vmul.f32 %v434, %v448
      %v451 = vsel %vm376, %v449, 0.0
      %452 = vadd.xlane.f32.xlu0 %v451
      %v453 = vpop.xlane.xlu0 %452
      %v454 = vsel %vm376, %v450, 0.0
      %455 = vadd.xlane.f32.xlu0 %v454
      %v456 = vpop.xlane.xlu0 %455
      %v457 = vmul.f32 %v453, 14.285714
      %v458 = vmul.f32 %v456, 14.285714
      %459 = vst.msk [vmem:[%s8] sm:$0xff] %vm376, %v417
      %460 = vst.msk [vmem:[%s8 + $0x8] sm:$0xff] %vm376, %v418
      %461 = vst.msk [vmem:[%s9] sm:$0xff] %vm376, %v433
      %462 = vst.msk [vmem:[%s9 + $0x8] sm:$0xff] %vm376, %v434
      %463 = vst.msk [vmem:[%s10] sm:$0xff] %vm376, %v447
      %464 = vst.msk [vmem:[%s10 + $0x8] sm:$0xff] %vm376, %v448
      %vm465 = vcmask 7168
      %466 = vst.msk [vmem:[%s11] sm:$0xff] %vm465, %v457
      %467 = vst.msk [vmem:[%s11 + $0x8] sm:$0xff] %vm465, %v458
      %v468 = vpack.c.bf16 %v434, %v433
      %469 = vst.msk [vmem:[#allocation2] sm:$0xff] %vm376, %v468
    $region37: #{tpu_custom_call.1} parent=1 // pred_fallthru
      _
    %v470 = vld [vmem:[#allocation2] sm:$0xff]
    %v471 = vld [vmem:[%s7] sm:$0xf]
    %v472 = vld [vmem:[%s7 + $0x4] sm:$0xf]
    %v473 = vld [vmem:[%s7 + $0x8] sm:$0xf]
    %v474 = vld [vmem:[%s7 + $0xc] sm:$0xf]
    %v475 = vld [vmem:[%s7 + $0x10] sm:$0xf]
    %v476 = vld [vmem:[%s7 + $0x14] sm:$0xf]
    %v477 = vld [vmem:[%s7 + $0x18] sm:$0xf]
    %v478 = vld [vmem:[%s7 + $0x1c] sm:$0xf]
    %v479 = vld [vmem:[%s7 + $0x20] sm:$0xf]
    %v480 = vld [vmem:[%s7 + $0x24] sm:$0xf]
    %v481 = vld [vmem:[%s7 + $0x28] sm:$0xf]
    %v482 = vld [vmem:[%s7 + $0x2c] sm:$0xf]
    %v483 = vld [vmem:[%s7 + $0x30] sm:$0xf]
    %v484 = vld [vmem:[%s7 + $0x34] sm:$0xf]
    %v485 = vld [vmem:[%s7 + $0x38] sm:$0xf]
    %v486 = vld [vmem:[%s7 + $0x3c] sm:$0xf]
    %v487 = vld [vmem:[%s7 + $0x40] sm:$0xf]
    %v488 = vld [vmem:[%s7 + $0x44] sm:$0xf]
    %v489 = vld [vmem:[%s7 + $0x48] sm:$0xf]
    %v490 = vld [vmem:[%s7 + $0x4c] sm:$0xf]
    %v491 = vld [vmem:[%s7 + $0x50] sm:$0xf]
    %v492 = vld [vmem:[%s7 + $0x54] sm:$0xf]
    %v493 = vld [vmem:[%s7 + $0x58] sm:$0xf]
    %v494 = vld [vmem:[%s7 + $0x5c] sm:$0xf]
    %v495 = vld [vmem:[%s7 + $0x60] sm:$0xf]
    %v496 = vld [vmem:[%s7 + $0x64] sm:$0xf]
    %v497 = vld [vmem:[%s7 + $0x68] sm:$0xf]
    %v498 = vld [vmem:[%s7 + $0x6c] sm:$0xf]
    %v499 = vld [vmem:[%s7 + $0x70] sm:$0xf]
    %v500 = vld [vmem:[%s7 + $0x74] sm:$0xf]
    %v501 = vld [vmem:[%s7 + $0x78] sm:$0xf]
    %v502 = vld [vmem:[%s7 + $0x7c] sm:$0xf]
    %v535 = vunpack.c.l.b16 %v471
    %v536 = vunpack.c.l.b16 %v472
    %v537 = vunpack.c.l.b16 %v473
    %v538 = vunpack.c.l.b16 %v474
    %v539 = vunpack.c.l.b16 %v475
    %v540 = vunpack.c.l.b16 %v476
    %v541 = vunpack.c.l.b16 %v477
    %v542 = vunpack.c.l.b16 %v478
    %v543 = vunpack.c.l.b16 %v479
    %v544 = vunpack.c.l.b16 %v480
    %v545 = vunpack.c.l.b16 %v481
    %v546 = vunpack.c.l.b16 %v482
    %v547 = vunpack.c.l.b16 %v483
    %v548 = vunpack.c.l.b16 %v484
    %v549 = vunpack.c.l.b16 %v485
    %v550 = vunpack.c.l.b16 %v486
    %v551 = vunpack.c.l.b16 %v487
    %v552 = vunpack.c.l.b16 %v488
    %v553 = vunpack.c.l.b16 %v489
    %v554 = vunpack.c.l.b16 %v490
    %v555 = vunpack.c.l.b16 %v491
    %v556 = vunpack.c.l.b16 %v492
    %v557 = vunpack.c.l.b16 %v493
    %v558 = vunpack.c.l.b16 %v494
    %v559 = vunpack.c.l.b16 %v495
    %v560 = vunpack.c.l.b16 %v496
    %v561 = vunpack.c.l.b16 %v497
    %v562 = vunpack.c.l.b16 %v498
    %v563 = vunpack.c.l.b16 %v499
    %v564 = vunpack.c.l.b16 %v500
    %v565 = vunpack.c.l.b16 %v501
    %v566 = vunpack.c.l.b16 %v502
    %v567 = vpack.c.b16 %v536, %v535
    %v568 = vpack.c.b16 %v538, %v537
    %v569 = vpack.c.b16 %v540, %v539
    %v570 = vpack.c.b16 %v542, %v541
    %v571 = vpack.c.b16 %v544, %v543
    %v572 = vpack.c.b16 %v546, %v545
    %v573 = vpack.c.b16 %v548, %v547
    %v574 = vpack.c.b16 %v550, %v549
    %v575 = vpack.c.b16 %v552, %v551
    %v576 = vpack.c.b16 %v554, %v553
    %v577 = vpack.c.b16 %v556, %v555
    %v578 = vpack.c.b16 %v558, %v557
    %v579 = vpack.c.b16 %v560, %v559
    %v580 = vpack.c.b16 %v562, %v561
    %v581 = vpack.c.b16 %v564, %v563
    %v582 = vpack.c.b16 %v566, %v565
    %vm583 = vcmask 64512
    %v585 = vsel %vm583, %v470, 0
    %v588 = vsel %vm583, %v567, 0
    %v591 = vsel %vm583, %v568, 0
    %v594 = vsel %vm583, %v569, 0
    %v597 = vsel %vm583, %v570, 0
    %v600 = vsel %vm583, %v571, 0
    %v603 = vsel %vm583, %v572, 0
    %v606 = vsel %vm583, %v573, 0
    %v609 = vsel %vm583, %v574, 0
    %v612 = vsel %vm583, %v575, 0
    %v615 = vsel %vm583, %v576, 0
    %v618 = vsel %vm583, %v577, 0
    %v621 = vsel %vm583, %v578, 0
    %v624 = vsel %vm583, %v579, 0
    %v627 = vsel %vm583, %v580, 0
    %v630 = vsel %vm583, %v581, 0
    %v633 = vsel %vm583, %v582, 0
    %635 = vmatprep.subr.bf16.mxu0 0
    %636 = vmatpush1.bf16.xpose.msra.mxu0 %v588
    %637 = vmatprep.subr.bf16.mxu0 0
    %638 = vmatpush1.bf16.xpose.msra.mxu0 %v591
    %639 = vmatprep.subr.bf16.mxu0 0
    %640 = vmatpush1.bf16.xpose.msra.mxu0 %v594
    %641 = vmatprep.subr.bf16.mxu0 0
    %642 = vmatpush1.bf16.xpose.msra.mxu0 %v597
    %643 = vmatprep.subr.bf16.mxu0 0
    %644 = vmatpush1.bf16.xpose.msra.mxu0 %v600
    %645 = vmatprep.subr.bf16.mxu0 0
    %646 = vmatpush1.bf16.xpose.msra.mxu0 %v603
    %647 = vmatprep.subr.bf16.mxu0 0
    %648 = vmatpush1.bf16.xpose.msra.mxu0 %v606
    %649 = vmatprep.subr.bf16.mxu0 0
    %650 = vmatpush1.bf16.xpose.msra.mxu0 %v609
    %651 = vmatprep.subr.bf16.mxu0 0
    %652 = vmatpush1.bf16.xpose.msra.mxu0 %v612
    %653 = vmatprep.subr.bf16.mxu0 0
    %654 = vmatpush1.bf16.xpose.msra.mxu0 %v615
    %655 = vmatprep.subr.bf16.mxu0 0
    %656 = vmatpush1.bf16.xpose.msra.mxu0 %v618
    %657 = vmatprep.subr.bf16.mxu0 0
    %658 = vmatpush1.bf16.xpose.msra.mxu0 %v621
    %659 = vmatprep.subr.bf16.mxu0 0
    %660 = vmatpush1.bf16.xpose.msra.mxu0 %v624
    %661 = vmatprep.subr.bf16.mxu0 0
    %662 = vmatpush1.bf16.xpose.msra.mxu0 %v627
    %663 = vmatprep.subr.bf16.mxu0 0
    %664 = vmatpush1.bf16.xpose.msra.mxu0 %v630
    %665 = vmatprep.subr.bf16.mxu0 0
    %666 = vmatpush1.bf16.xpose.msra.mxu0 %v633
    %667 = vmatprep.mubr.bf16.mxu0 0
    %668 = vmatmul.mubr.bf16.gmra.mrb[0].mxu0 %v585
    %v669 = vpop.f32.mrb[0].mxu0
    %v670 = vadd.f32 0.0, %v669
    %v671 = vpop.f32.mrb[0].mxu0
    %v672 = vadd.f32 0.0, %v671
    %v673 = vpop.f32.mrb[0].mxu0
    %v674 = vadd.f32 0.0, %v673
    %v675 = vpop.f32.mrb[0].mxu0
    %v676 = vadd.f32 0.0, %v675
    %677 = vdwg.mxu0
    %v678 = vmul.f32 %v670, 14.285714
    %v679 = vmul.f32 %v672, 14.285714
    %v680 = vmul.f32 %v674, 14.285714
    %v681 = vmul.f32 %v676, 14.285714
    %682 = vst [vmem:[#allocation3] sm:$0xff] %v678
    %683 = vst [vmem:[#allocation3 + $0x8] sm:$0xff] %v679
    %684 = vst [vmem:[#allocation3 + $0x10] sm:$0xff] %v680
    %685 = vst [vmem:[#allocation3 + $0x18] sm:$0xff] %v681
    // Predicated region
    $region38: #{tpu_custom_call.1} parent=1 // pred_check
      _
    $region39: #{tpu_custom_call.1} parent=1 // pred_check_branch
      %687 = sbr.rel (0) target = $region41
    $region40: #{tpu_custom_call.1} parent=1 // pred_region
      _
    $region41: #{tpu_custom_call.1} parent=1 // pred_fallthru
      _
    // Predicated region
    $region42: #{tpu_custom_call.1} parent=1 // pred_check
      _
    $region43: #{tpu_custom_call.1} parent=1 // pred_check_branch
      %689 = sbr.rel (0) target = $region45
    $region44: #{tpu_custom_call.1} parent=1 // pred_region
      _
    $region45: #{tpu_custom_call.1} parent=1 // pred_fallthru
      _
    // Predicated region
    $region46: #{tpu_custom_call.1} parent=1 // pred_check
      _
    $region47: #{tpu_custom_call.1} parent=1 // pred_check_branch
      %691 = sbr.rel (0) target = $region49
    $region48: #{tpu_custom_call.1} parent=1 // pred_region
      _
    $region49: #{tpu_custom_call.1} parent=1 // pred_fallthru
      _
    // Predicated region
    $region50: #{tpu_custom_call.1} parent=1 // pred_check
      _
    $region51: #{tpu_custom_call.1} parent=1 // pred_check_branch
      %693 = sbr.rel (0) target = $region53
    $region52: #{tpu_custom_call.1} parent=1 // pred_region
      _
    $region53: #{tpu_custom_call.1} parent=1 // pred_fallthru
      _
    // Predicated region
    $region54: #{tpu_custom_call.1} parent=1 // pred_check
      _
    $region55: #{tpu_custom_call.1} parent=1 // pred_check_branch
      %695 = sbr.rel (0) target = $region57
    $region56: #{tpu_custom_call.1} parent=1 // pred_region
      %s697 = ssub.s32 512, 512
      %698 = vsyncadd [#allocation4], %s697
      %s699 = sshll.u32 [#allocation3], 4
      %s700 = int_to_ptr.vmem [resolvable:$true] %s699
      %705 = dma.vmem_to_hbm [thread:$0]  %s700, 512, %s12, [#allocation4], 256, 256, 16
    $region57: #{tpu_custom_call.1} parent=1 // pred_fallthru
      _
    // Predicated region
    $region58: #{tpu_custom_call.1} parent=1 // pred_check
      _
    $region59: #{tpu_custom_call.1} parent=1 // pred_check_branch
      %707 = sbr.rel (0) target = $region61
    $region60: #{tpu_custom_call.1} parent=1 // pred_region
      _
    $region61: #{tpu_custom_call.1} parent=1 // pred_fallthru
      _
    // Predicated region
    $region62: #{tpu_custom_call.1} parent=1 // pred_check
      _
    $region63: #{tpu_custom_call.1} parent=1 // pred_check_branch
      %709 = sbr.rel (0) target = $region65
    $region64: #{tpu_custom_call.1} parent=1 // pred_region
      _
    $region65: #{tpu_custom_call.1} parent=1 // pred_fallthru
      _
    // Predicated region
    $region66: #{tpu_custom_call.1} parent=1 // pred_check
      _
    $region67: #{tpu_custom_call.1} parent=1 // pred_check_branch
      %711 = sbr.rel (0) target = $region69
    $region68: #{tpu_custom_call.1} parent=1 // pred_region
      _
    $region69: #{tpu_custom_call.1} parent=1 // pred_fallthru
      _
    // Predicated region
    $region70: #{tpu_custom_call.1} parent=1 // pred_check
      _
    $region71: #{tpu_custom_call.1} parent=1 // pred_check_branch
      %713 = sbr.rel (0) target = $region73
    $region72: #{tpu_custom_call.1} parent=1 // pred_region
      _
    $region73: #{tpu_custom_call.1} parent=1 // pred_fallthru
      _
    // Predicated region
    $region74: #{tpu_custom_call.1} parent=1 // pred_check
      _
    $region75: #{tpu_custom_call.1} parent=1 // pred_check_branch
      %715 = sbr.rel (0) target = $region77
    $region76: #{tpu_custom_call.1} parent=1 // pred_region
      %716 = dma.done [#allocation4], 512
    $region77: #{tpu_custom_call.1} parent=1 // pred_fallthru
      _
    %717 = vsyncpa [#allocation4], 1

</llo_original>
